<compile_context>
chip_gen: v7x
topology: tpu7x:2x2x1
jax: 0.10.0
libtpu: 0.0.40
codegen_flags: <defaults>
</compile_context>

<pallas_src>
import functools

import jax
import jax.numpy as jnp
from jax import lax
from jax.experimental import pallas as pl
from jax.experimental.pallas import tpu as pltpu

BN_EPS = 1e-5


def _round_up(x, m):
    return (x + m - 1) // m * m


def _cdiv(a, b):
    return (a + b - 1) // b


# --------------------------------------------------------------------------- #
# Kernels
# --------------------------------------------------------------------------- #
def _conv_stats_kernel(p_ref, w_ref, y_ref, stats_ref):
    """Phase 1: conv-as-matmul for one (M, OC) tile + per-tile channel partials.

    p_ref:     (TM, Kp)  bf16  im2col patch rows (K zero-padded to 128 multiple)
    w_ref:     (Kp, TN)  bf16  flattened conv weight slice
    y_ref:     (TM, TN)  bf16  conv output tile (pre-BN, stored narrow)
    stats_ref: (8, TN)   f32   row 0 = sum(y), row 1 = sum(y*y), rest 0
    """
    y = jnp.dot(p_ref[...], w_ref[...], preferred_element_type=jnp.float32)
    # Narrow writeback halves HBM traffic; stats come from the f32 accumulator
    # *before* the cast so BN statistics are unaffected by the bf16 storage.
    y_ref[...] = y.astype(y_ref.dtype)
    s = jnp.sum(y, axis=0, keepdims=True)            # (1, TN)
    sq = jnp.sum(y * y, axis=0, keepdims=True)       # (1, TN)
    rid = lax.broadcasted_iota(jnp.int32, stats_ref.shape, 0)
    stats_ref[...] = jnp.where(rid == 0, s, jnp.where(rid == 1, sq, 0.0))


def _normalize_kernel(y_ref, scale_ref, shift_ref, o_ref):
    """Phase 2: folded BN affine, out = y * scale + shift (per channel), f32 math."""
    y = y_ref[...].astype(jnp.float32)
    o_ref[...] = (y * scale_ref[...] + shift_ref[...]).astype(o_ref.dtype)


# --------------------------------------------------------------------------- #
# Host-side helpers
# --------------------------------------------------------------------------- #
def _im2col_nhwc(x, kernel_size, stride, padding):
    """x (N,C,H,W) -> patches (N*OH*OW, KH*KW*C) with C minormost.

    x is transposed to NHWC once (pre-expansion, cheap) so the expanded array
    is produced by strided slices + stack + reshape with no relayout pass over
    the KH*KW-expanded tensor.
    """
    n, c, h, w = x.shape
    kh = kw = kernel_size
    oh = (h + 2 * padding - kh) // stride + 1
    ow = (w + 2 * padding - kw) // stride + 1
    xn = jnp.transpose(x, (0, 2, 3, 1))                                   # NHWC
    xp = jnp.pad(xn, ((0, 0), (padding, padding), (padding, padding), (0, 0)))
    cols = [xp[:, i:i + stride * oh:stride, j:j + stride * ow:stride, :]
            for i in range(kh) for j in range(kw)]
    p = jnp.stack(cols, axis=3)                                # (N,OH,OW,KH*KW,C)
    return p.reshape(n * oh * ow, kh * kw * c), oh, ow


def _vmem_capacity_bytes():
    try:
        info = pltpu.get_tpu_info()
        cap = getattr(info, "vmem_capacity_bytes", None)
        if cap:
            return int(cap)
    except Exception:
        pass
    return 64 << 20  # conservative default (v7x per-TensorCore VMEM)


def _phase1_footprint(tm, tn, k_pad):
    # Double-buffered VMEM blocks: patches(bf16) + weight(bf16) + y(bf16) + stats(f32).
    return 2 * (tm * k_pad * 2 + k_pad * tn * 2 + tm * tn * 2 + 8 * tn * 4)


def _select_tiles(m, k_pad, ocp, tile_m, vmem_cap):
    budget = int(min(vmem_cap, 128 << 20) * 0.4)
    m_r8 = _round_up(m, 8)
    tm = min(_round_up(tile_m, 8), m_r8)

    # Output-channel tiling: bounds the per-step footprint on large-OC / large-K
    # layers (matters on v7x with 64 MiB VMEM per TensorCore).
    q = ocp // 128
    tn_opts = sorted({d * 128 for d in range(1, q + 1) if q % d == 0}, reverse=True)
    tn = tn_opts[-1]
    for cand in tn_opts:
        if _phase1_footprint(tm, cand, k_pad) <= budget:
            tn = cand
            break
    while _phase1_footprint(tm, tn, k_pad) > budget and tm >= 256:
        tm = _round_up(tm // 2, 8)

    # v7x megacore: prefer an even number of M tiles so both TensorCores get work.
    m_pad = _round_up(m, tm)
    nt = m_pad // tm
    if nt > 1 and nt % 2 == 1:
        tm2 = _round_up(_cdiv(m_r8, nt + 1), 8)
        m_pad2 = _round_up(m, tm2)
        if (m_pad2 // tm2) % 2 == 0:
            tm, m_pad = tm2, m_pad2
    return tm, tn, m_pad


def _vmem_limit(footprint, vmem_cap):
    hi = int(min(vmem_cap, 128 << 20) * 0.9)
    want = int(footprint * 1.3) + (4 << 20)
    return max(min(max(want, 32 << 20), hi), 1 << 20)


# --------------------------------------------------------------------------- #
# ConvBn forward
# --------------------------------------------------------------------------- #
@functools.partial(
    jax.jit,
    static_argnames=("kernel_size", "stride", "padding", "tile_m", "use_bf16"),
)
def conv_bn(x, conv_w, conv_b, bn_gamma, bn_beta, *, kernel_size, stride, padding,
            tile_m=512, use_bf16=True):
    """Forward pass of ConvBn.

    x:        (N, C, H, W)      float32
    conv_w:   (OC, C, KH, KW)   float32 (PyTorch Conv2d weight layout)
    conv_b:   (OC,)             float32 (unused: cancelled exactly by training BN)
    bn_gamma: (OC,)             float32
    bn_beta:  (OC,)             float32
    returns   (N, OC, OH, OW)   float32
    """
    n, c, h, w = x.shape
    oc = conv_w.shape[0]
    k = c * kernel_size * kernel_size

    patches, oh, ow = _im2col_nhwc(x, kernel_size, stride, padding)   # (M, K) f32
    m = patches.shape[0]

    mm_dtype = jnp.bfloat16 if use_bf16 else jnp.float32
    y_dtype = jnp.bfloat16 if use_bf16 else jnp.float32
    mm_size = jnp.dtype(mm_dtype).itemsize
    y_size = jnp.dtype(y_dtype).itemsize

    # --- lane/sublane-dense padding + VMEM-budgeted tiles ---------------------
    ocp = _round_up(max(oc, 128), 128)      # dense output lanes (unmasked vst)
    k_pad = _round_up(k, 128)               # dense contraction dim (full MXU feed)
    vmem_cap = _vmem_capacity_bytes()
    tm, tn, m_pad = _select_tiles(m, k_pad, ocp, tile_m, vmem_cap)
    num_m = m_pad // tm
    num_n = ocp // tn

    patches_p = jnp.pad(patches, ((0, m_pad - m), (0, k_pad - k))).astype(mm_dtype)
    # (OC,C,KH,KW) -> (KH,KW,C,OC) -> (K,OC): matches the C-minormost patch order.
    w2d = jnp.transpose(conv_w, (2, 3, 1, 0)).reshape(k, oc)
    w2d = jnp.pad(w2d, ((0, k_pad - k), (0, ocp - oc))).astype(mm_dtype)

    # Conv bias dropped: exactly cancelled by training-mode BN mean subtraction.
    # TODO(synk): re-introduce conv_b if eval-mode (running-stats) BN is ever used.
    del conv_b

    # --- phase 1: tiled matmul + per-tile channel partial statistics ----------
    footprint1 = _phase1_footprint(tm, tn, k_pad)
    flops = 2 * m_pad * k_pad * ocp
    bytes_accessed = (m_pad * k_pad * mm_size + num_m * k_pad * ocp * mm_size
                      + m_pad * ocp * y_size + num_m * 8 * ocp * 4)
    y, stats = pl.pallas_call(
        _conv_stats_kernel,
        out_shape=(jax.ShapeDtypeStruct((m_pad, ocp), y_dtype),
                   jax.ShapeDtypeStruct((num_m * 8, ocp), jnp.float32)),
        grid=(num_m, num_n),
        in_specs=[pl.BlockSpec((tm, k_pad), lambda i, j: (i, 0)),
                  pl.BlockSpec((k_pad, tn), lambda i, j: (0, j))],
        out_specs=(pl.BlockSpec((tm, tn), lambda i, j: (i, j)),
                   pl.BlockSpec((8, tn), lambda i, j: (i, j))),
        compiler_params=pltpu.CompilerParams(
            dimension_semantics=("parallel", "parallel"),
            vmem_limit_bytes=_vmem_limit(footprint1, vmem_cap)),
        cost_estimate=pl.CostEstimate(flops=flops, transcendentals=0,
                                      bytes_accessed=bytes_accessed),
    )(patches_p, w2d)

    # --- global BN statistics (tiny (OCp,) math, left to XLA) -----------------
    # TODO(synk): E[y^2]-E[y]^2 in f32 loses precision for very large M; switch
    # to per-tile (count, mean, M2) + Chan's combination if that regime matters.
    stats = stats.reshape(num_m, 8, ocp)
    col_sum = jnp.sum(stats[:, 0, :], axis=0)              # (OCp,)
    col_sqsum = jnp.sum(stats[:, 1, :], axis=0)            # (OCp,)
    mean = col_sum / m                                      # true M (pad rows are zero)
    var = jnp.maximum(col_sqsum / m - mean * mean, 0.0)     # biased, as torch training BN
    inv_std = lax.rsqrt(var + BN_EPS)
    gamma_p = jnp.pad(bn_gamma, (0, ocp - oc))
    beta_p = jnp.pad(bn_beta, (0, ocp - oc))
    scale = (gamma_p * inv_std).reshape(1, ocp)
    shift = (beta_p - mean * gamma_p * inv_std).reshape(1, ocp)

    # --- phase 2: normalize (folded per-channel affine), HBM-bound ------------
    footprint2 = 2 * (tm * ocp * y_size + tm * ocp * 4) + 4 * ocp * 4
    out2d = pl.pallas_call(
        _normalize_kernel,
        out_shape=jax.ShapeDtypeStruct((m_pad, ocp), jnp.float32),
        grid=(num_m,),
        in_specs=[pl.BlockSpec((tm, ocp), lambda i: (i, 0)),
                  pl.BlockSpec((1, ocp), lambda i: (0, 0)),
                  pl.BlockSpec((1, ocp), lambda i: (0, 0))],
        out_specs=pl.BlockSpec((tm, ocp), lambda i: (i, 0)),
        compiler_params=pltpu.CompilerParams(
            dimension_semantics=("parallel",),
            vmem_limit_bytes=_vmem_limit(footprint2, vmem_cap)),
        cost_estimate=pl.CostEstimate(
            flops=2 * m_pad * ocp, transcendentals=0,
            bytes_accessed=m_pad * ocp * (y_size + 4) + 2 * ocp * 4),
    )(y, scale, shift)

    # (M, OCp) -> (N, OH, OW, OC) -> NCHW (matches the PyTorch module output).
    # TODO(synk): the final NCHW transpose is an extra XLA relayout pass; return
    # NHWC if the downstream consumer allows it.
    out = out2d[:m, :oc].reshape(n, oh, ow, oc).transpose(0, 3, 1, 2)
    return out


# --------------------------------------------------------------------------- #
# References
# --------------------------------------------------------------------------- #
def _reference_f32(x, conv_w, conv_b, bn_gamma, bn_beta, *, stride, padding):
    """Pure f32 conv + training-mode batchnorm (with conv bias)."""
    y = lax.conv_general_dilated(
        x, conv_w, window_strides=(stride, stride),
        padding=[(padding, padding), (padding, padding)],
        dimension_numbers=("NCHW", "OIHW", "NCHW"),
    ) + conv_b.reshape(1, -1, 1, 1)
    mean = jnp.mean(y, axis=(0, 2, 3), keepdims=True)
    var = jnp.mean((y - mean) ** 2, axis=(0, 2, 3), keepdims=True)
    y_hat = (y - mean) * lax.rsqrt(var + BN_EPS)
    return y_hat * bn_gamma.reshape(1, -1, 1, 1) + bn_beta.reshape(1, -1, 1, 1)


def _reference_matched(x, conv_w, bn_gamma, bn_beta, *, stride, padding):
    """Mirrors the kernel's dtype strategy: bf16 matmul operands, f32 accum and
    stats, bf16 storage of y, folded f32 affine, bias dropped."""
    y = lax.conv_general_dilated(
        x.astype(jnp.bfloat16), conv_w.astype(jnp.bfloat16),
        window_strides=(stride, stride),
        padding=[(padding, padding), (padding, padding)],
        dimension_numbers=("NCHW", "OIHW", "NCHW"),
        preferred_element_type=jnp.float32)
    mean = jnp.mean(y, axis=(0, 2, 3), keepdims=True)
    var = jnp.mean((y - mean) ** 2, axis=(0, 2, 3), keepdims=True)
    inv_std = lax.rsqrt(var + BN_EPS)
    scale = bn_gamma.reshape(1, -1, 1, 1) * inv_std
    shift = bn_beta.reshape(1, -1, 1, 1) - mean * scale
    y_bf = y.astype(jnp.bfloat16).astype(jnp.float32)
    return y_bf * scale + shift


if __name__ == "__main__":
    # Small, module-consistent shapes.
    N, C, H, W = 2, 4, 16, 16
    OC, KS, STRIDE, PAD = 8, 3, 1, 1

    key = jax.random.PRNGKey(0)
    kx, kw_, kb, kg, kbt = jax.random.split(key, 5)

    x = jax.random.normal(kx, (N, C, H, W), dtype=jnp.float32)
    conv_w = jax.random.normal(kw_, (OC, C, KS, KS), dtype=jnp.float32) * 0.1
    conv_b = jax.random.normal(kb, (OC,), dtype=jnp.float32) * 0.1
    bn_gamma = 1.0 + 0.1 * jax.random.normal(kg, (OC,), dtype=jnp.float32)
    bn_beta = 0.1 * jax.random.normal(kbt, (OC,), dtype=jnp.float32)

    # tile_m=128 -> a 4-step M grid at this size (M = 2*16*16 = 512), exercising
    # the multi-tile (partial-stats -> combine -> normalize) structure.
    out = conv_bn(x, conv_w, conv_b, bn_gamma, bn_beta,
                  kernel_size=KS, stride=STRIDE, padding=PAD, tile_m=128)
    out = jax.block_until_ready(out)
    assert out.shape == (N, OC, H, W), out.shape

    ref_m = _reference_matched(x, conv_w, bn_gamma, bn_beta, stride=STRIDE, padding=PAD)
    ref_f = _reference_f32(x, conv_w, conv_b, bn_gamma, bn_beta, stride=STRIDE, padding=PAD)
    err_m = float(jnp.max(jnp.abs(out - ref_m)))   # matched-precision reference
    err_f = float(jnp.max(jnp.abs(out - ref_f)))   # pure-f32 reference (incl. bias)
    assert err_m < 2e-2, ("matched-precision reference mismatch", err_m)
    assert err_f < 7e-2, ("f32 reference mismatch", err_f)

    print("KERNEL_OK")
</pallas_src>

<mosaic_0001>
module attributes {stable_mosaic.version = 11 : i64} {
  func.func @_conv_stats_kernel(%arg0: i32, %arg1: i32, %arg2: memref<128x128xbf16, #tpu.memory_space<vmem>>, %arg3: memref<128x128xbf16, #tpu.memory_space<vmem>>, %arg4: memref<128x128xbf16, #tpu.memory_space<vmem>>, %arg5: memref<8x128xf32, #tpu.memory_space<vmem>>) attributes {dimension_semantics = [#tpu.dimension_semantics<parallel>, #tpu.dimension_semantics<parallel>], iteration_bounds = array<i64: 4, 1>, scalar_prefetch = 0 : i64, scratch_operands = 0 : i64, tpu.core_type = #tpu.core_type<tc>, window_params = [{transform_indices = @transform_0, window_bounds = array<i64: 128, 128>}, {transform_indices = @transform_1, window_bounds = array<i64: 128, 128>}, {transform_indices = @transform_2, window_bounds = array<i64: 128, 128>}, {transform_indices = @transform_3, window_bounds = array<i64: 8, 128>}]} {
    %c0 = arith.constant 0 : index
    %c0_0 = arith.constant 0 : index
    %0 = vector.load %arg2[%c0, %c0_0] : memref<128x128xbf16, #tpu.memory_space<vmem>>, vector<128x128xbf16>
    %c0_1 = arith.constant 0 : index
    %c0_2 = arith.constant 0 : index
    %1 = vector.load %arg3[%c0_1, %c0_2] : memref<128x128xbf16, #tpu.memory_space<vmem>>, vector<128x128xbf16>
    %cst = arith.constant dense<0.000000e+00> : vector<128x128xf32>
    %2 = tpu.matmul %0, %1, %cst {dimension_numbers = #tpu.dot_dimension_numbers<[1], [0], [0], [1], [0, 0, 1, 1], [], []>} : vector<128x128xbf16>, vector<128x128xbf16>, vector<128x128xf32> -> vector<128x128xf32>
    %3 = arith.truncf %2 : vector<128x128xf32> to vector<128x128xbf16>
    %c0_3 = arith.constant 0 : index
    %c0_4 = arith.constant 0 : index
    %4 = vector.load %arg4[%c0_3, %c0_4] : memref<128x128xbf16, #tpu.memory_space<vmem>>, vector<128x128xbf16>
    tpu.vector_store %arg4[%c0_3, %c0_4], %3 {strides = array<i32>} : memref<128x128xbf16, #tpu.memory_space<vmem>>, vector<128x128xbf16>,
    %cst_5 = arith.constant dense<0.000000e+00> : vector<128xf32>
    %5 = vector.multi_reduction <add>, %2, %cst_5 [0] : vector<128x128xf32> to vector<128xf32>
    %6 = vector.shape_cast %5 : vector<128xf32> to vector<1x128xf32>
    %7 = arith.mulf %2, %2 : vector<128x128xf32>
    %cst_6 = arith.constant dense<0.000000e+00> : vector<128xf32>
    %8 = vector.multi_reduction <add>, %7, %cst_6 [0] : vector<128x128xf32> to vector<128xf32>
    %9 = vector.shape_cast %8 : vector<128xf32> to vector<1x128xf32>
    %10 = tpu.iota {dimensions = array<i32: 0>} : vector<8x128xi32>
    %c0_i32 = arith.constant 0 : i32
    %11 = vector.broadcast %c0_i32 : i32 to vector<8x128xi32>
    %12 = arith.cmpi eq, %10, %11 : vector<8x128xi32>
    %c1_i32 = arith.constant 1 : i32
    %13 = vector.broadcast %c1_i32 : i32 to vector<8x128xi32>
    %14 = arith.cmpi eq, %10, %13 : vector<8x128xi32>
    %cst_7 = arith.constant 0.000000e+00 : f32
    %15 = vector.shape_cast %9 : vector<1x128xf32> to vector<1x128xf32>
    %16 = vector.broadcast %15 : vector<1x128xf32> to vector<8x128xf32>
    %17 = vector.broadcast %cst_7 : f32 to vector<8x128xf32>
    %18 = arith.select %14, %16, %17 : vector<8x128xi1>, vector<8x128xf32>
    %19 = vector.shape_cast %6 : vector<1x128xf32> to vector<1x128xf32>
    %20 = vector.broadcast %19 : vector<1x128xf32> to vector<8x128xf32>
    %21 = arith.select %12, %20, %18 : vector<8x128xi1>, vector<8x128xf32>
    %c0_8 = arith.constant 0 : index
    %c0_9 = arith.constant 0 : index
    %22 = vector.load %arg5[%c0_8, %c0_9] : memref<8x128xf32, #tpu.memory_space<vmem>>, vector<8x128xf32>
    tpu.vector_store %arg5[%c0_8, %c0_9], %21 {strides = array<i32>} : memref<8x128xf32, #tpu.memory_space<vmem>>, vector<8x128xf32>,
    return
  }
  func.func @transform_0(%arg0: i32, %arg1: i32) -> (i32, i32) {
    %c0_i32 = arith.constant 0 : i32
    %c0_i32_0 = arith.constant 0 : i32
    return %arg0, %c0_i32 : i32, i32
  }
  func.func @transform_1(%arg0: i32, %arg1: i32) -> (i32, i32) {
    %c0_i32 = arith.constant 0 : i32
    %c0_i32_0 = arith.constant 0 : i32
    return %c0_i32, %arg1 : i32, i32
  }
  func.func @transform_2(%arg0: i32, %arg1: i32) -> (i32, i32) {
    %c0_i32 = arith.constant 0 : i32
    return %arg0, %arg1 : i32, i32
  }
  func.func @transform_3(%arg0: i32, %arg1: i32) -> (i32, i32) {
    %c0_i32 = arith.constant 0 : i32
    return %arg0, %arg1 : i32, i32
  }
}

module attributes {stable_mosaic.version = 11 : i64} {
  func.func @_normalize_kernel(%arg0: i32, %arg1: memref<128x128xbf16, #tpu.memory_space<vmem>>, %arg2: memref<1x128xf32, #tpu.memory_space<vmem>>, %arg3: memref<1x128xf32, #tpu.memory_space<vmem>>, %arg4: memref<128x128xf32, #tpu.memory_space<vmem>>) attributes {dimension_semantics = [#tpu.dimension_semantics<parallel>], iteration_bounds = array<i64: 4>, scalar_prefetch = 0 : i64, scratch_operands = 0 : i64, tpu.core_type = #tpu.core_type<tc>, window_params = [{transform_indices = @transform_0, window_bounds = array<i64: 128, 128>}, {pipeline_mode = #tpu.pipeline_mode<synchronous>, transform_indices = @transform_1, window_bounds = array<i64: 1, 128>}, {pipeline_mode = #tpu.pipeline_mode<synchronous>, transform_indices = @transform_2, window_bounds = array<i64: 1, 128>}, {transform_indices = @transform_3, window_bounds = array<i64: 128, 128>}]} {
    %c0 = arith.constant 0 : index
    %c0_0 = arith.constant 0 : index
    %0 = vector.load %arg1[%c0, %c0_0] : memref<128x128xbf16, #tpu.memory_space<vmem>>, vector<128x128xbf16>
    %1 = arith.extf %0 : vector<128x128xbf16> to vector<128x128xf32>
    %c0_1 = arith.constant 0 : index
    %c0_2 = arith.constant 0 : index
    %2 = vector.load %arg2[%c0_1, %c0_2] : memref<1x128xf32, #tpu.memory_space<vmem>>, vector<1x128xf32>
    %3 = vector.broadcast %2 : vector<1x128xf32> to vector<128x128xf32>
    %4 = arith.mulf %1, %3 : vector<128x128xf32>
    %c0_3 = arith.constant 0 : index
    %c0_4 = arith.constant 0 : index
    %5 = vector.load %arg3[%c0_3, %c0_4] : memref<1x128xf32, #tpu.memory_space<vmem>>, vector<1x128xf32>
    %6 = vector.broadcast %5 : vector<1x128xf32> to vector<128x128xf32>
    %7 = arith.addf %4, %6 : vector<128x128xf32>
    %c0_5 = arith.constant 0 : index
    %c0_6 = arith.constant 0 : index
    %8 = vector.load %arg4[%c0_5, %c0_6] : memref<128x128xf32, #tpu.memory_space<vmem>>, vector<128x128xf32>
    tpu.vector_store %arg4[%c0_5, %c0_6], %7 {strides = array<i32>} : memref<128x128xf32, #tpu.memory_space<vmem>>, vector<128x128xf32>,
    return
  }
  func.func @transform_0(%arg0: i32) -> (i32, i32) {
    %c0_i32 = arith.constant 0 : i32
    %c0_i32_0 = arith.constant 0 : i32
    return %arg0, %c0_i32 : i32, i32
  }
  func.func @transform_1(%arg0: i32) -> (i32, i32) {
    %c0_i32 = arith.constant 0 : i32
    %c0_i32_0 = arith.constant 0 : i32
    %c0_i32_1 = arith.constant 0 : i32
    return %c0_i32, %c0_i32_0 : i32, i32
  }
  func.func @transform_2(%arg0: i32) -> (i32, i32) {
    %c0_i32 = arith.constant 0 : i32
    %c0_i32_0 = arith.constant 0 : i32
    %c0_i32_1 = arith.constant 0 : i32
    return %c0_i32, %c0_i32_0 : i32, i32
  }
  func.func @transform_3(%arg0: i32) -> (i32, i32) {
    %c0_i32 = arith.constant 0 : i32
    %c0_i32_0 = arith.constant 0 : i32
    return %arg0, %c0_i32 : i32, i32
  }
}

</mosaic_0001>

<llo_original>
// kernel: conv_bn.3
$region0: #{conv_bn.3}
  #allocation0 [shape = 'u32[]', space=smem, size = 0x4, offset = 0x4, fixed_abs, tag = 'smem constant byte address 0x4 - core index']
  #allocation1 [shape = 'u32[144,128]{1,0:T(1,128)}', space=vmem, size = 0x12000, scoped, tag = 'internal scratch']
  %s0 = inlined_call_operand.vmem [shape: bf16[512,128], index: 0, kind: input, shape index: {}]
  %s1 = inlined_call_operand.vmem [shape: f32[1,128], index: 1, kind: input, shape index: {}]
  %s2 = inlined_call_operand.vmem [shape: f32[1,128], index: 2, kind: input, shape index: {}]
  %s3 = inlined_call_operand.vmem [shape: f32[512,128], index: 3, kind: output, shape index: {}]
  %s4 = sld [smem:[#allocation0]]
  $region45: #{conv_bn.3} parent=0
    _
  %s6 = ssub.s32 1, %s4
  %s7 = scalar_select 0, %s6, %s4
  loop: start=0, step=1, limit=6
  $region2: #{conv_bn.3} parent=0 // loop_pre_header
    _
  $region3: #{conv_bn.3} parent=0 // loop_header
    %s9 = sphi 0, %s13
    %p10 = scmp.ge.s32.totalorder %s9, 6
    %s19 = sphi 0, %s21
    %s22 = sphi 0, %s19
    %s23 = sphi 0, %s22
    %s39 = sphi 0, %s23
    %s43 = sphi 0, %s43
    %s45 = sphi 0, %s43
    %s46 = sphi 0, %s45
    %s60 = sphi 0, %s46
    %s64 = sphi 0, %s64
    %s66 = sphi 0, %s64
    %s67 = sphi 0, %s66
    %s81 = sphi 0, %s67
    %s87 = sphi 0, %s89
    %s90 = sphi 0, %s87
    %s91 = sphi 0, %s90
    %s107 = sphi 0, %s91
  $region4: #{conv_bn.3} parent=0 // loop_header_branch
    %12 = sbr.rel (%p10) target = $region8
  $region5: #{conv_bn.3} parent=0 // loop_body
    %s14 = ssub.s32 %s9, 1
    %s15 = ssub.s32 %s9, 2
    %s16 = sadd.s32 %s9, 1
    %s17 = ssub.s32 %s9, %s16
    %p18 = scmp.eq.s32.totalorder %s17, 0
    %s20 = sadd.s32 %s19, 1
    %s21 = scalar_select %p18, %s19, %s20
    %p24 = pneg %p18
    %p25 = scmp.eq.s32.totalorder %s9, 3
    %p26 = por %p24, %p25
    %p27 = scmp.ne.s32.totalorder %s19, %s22
    %p28 = scmp.eq.s32.totalorder %s9, 0
    %p29 = por %p27, %p28
    %p30 = scmp.ne.s32.totalorder %s19, %s22
    %p31 = scmp.eq.s32.totalorder %s14, 3
    %p32 = por %p30, %p31
    %p33 = scmp.ne.s32.totalorder %s22, %s23
    %p34 = scmp.eq.s32.totalorder %s14, 0
    %p35 = por %p33, %p34
    %p36 = scmp.ne.s32.totalorder %s22, %s23
    %p37 = scmp.eq.s32.totalorder %s15, 3
    %p38 = por %p36, %p37
    %p40 = scmp.ne.s32.totalorder %s23, %s39
    %p41 = scmp.eq.s32.totalorder %s15, 0
    %p42 = por %p40, %p41
    %s44 = sadd.s32 %s43, 1
    %p47 = scmp.eq.s32.totalorder %s9, 3
    %p48 = scmp.ne.s32.totalorder %s43, %s45
    %p49 = scmp.eq.s32.totalorder %s9, 0
    %p50 = por %p48, %p49
    %p51 = scmp.ne.s32.totalorder %s43, %s45
    %p52 = scmp.eq.s32.totalorder %s14, 3
    %p53 = por %p51, %p52
    %p54 = scmp.ne.s32.totalorder %s45, %s46
    %p55 = scmp.eq.s32.totalorder %s14, 0
    %p56 = por %p54, %p55
    %p57 = scmp.ne.s32.totalorder %s45, %s46
    %p58 = scmp.eq.s32.totalorder %s15, 3
    %p59 = por %p57, %p58
    %p61 = scmp.ne.s32.totalorder %s46, %s60
    %p62 = scmp.eq.s32.totalorder %s15, 0
    %p63 = por %p61, %p62
    %s65 = sadd.s32 %s64, 1
    %p68 = scmp.eq.s32.totalorder %s9, 3
    %p69 = scmp.ne.s32.totalorder %s64, %s66
    %p70 = scmp.eq.s32.totalorder %s9, 0
    %p71 = por %p69, %p70
    %p72 = scmp.ne.s32.totalorder %s64, %s66
    %p73 = scmp.eq.s32.totalorder %s14, 3
    %p74 = por %p72, %p73
    %p75 = scmp.ne.s32.totalorder %s66, %s67
    %p76 = scmp.eq.s32.totalorder %s14, 0
    %p77 = por %p75, %p76
    %p78 = scmp.ne.s32.totalorder %s66, %s67
    %p79 = scmp.eq.s32.totalorder %s15, 3
    %p80 = por %p78, %p79
    %p82 = scmp.ne.s32.totalorder %s67, %s81
    %p83 = scmp.eq.s32.totalorder %s15, 0
    %p84 = por %p82, %p83
    %s85 = ssub.s32 %s9, %s16
    %p86 = scmp.eq.s32.totalorder %s85, 0
    %s88 = sadd.s32 %s87, 1
    %s89 = scalar_select %p86, %s87, %s88
    %p92 = pneg %p86
    %p93 = scmp.eq.s32.totalorder %s9, 3
    %p94 = por %p92, %p93
    %p95 = scmp.ne.s32.totalorder %s87, %s90
    %p96 = scmp.eq.s32.totalorder %s9, 0
    %p97 = por %p95, %p96
    %p98 = scmp.ne.s32.totalorder %s87, %s90
    %p99 = scmp.eq.s32.totalorder %s14, 3
    %p100 = por %p98, %p99
    %p101 = scmp.ne.s32.totalorder %s90, %s91
    %p102 = scmp.eq.s32.totalorder %s14, 0
    %p103 = por %p101, %p102
    %p104 = scmp.ne.s32.totalorder %s90, %s91
    %p105 = scmp.eq.s32.totalorder %s15, 3
    %p106 = por %p104, %p105
    %p108 = scmp.ne.s32.totalorder %s91, %s107
    %p109 = scmp.eq.s32.totalorder %s15, 0
    %p110 = por %p108, %p109
    %p111 = scmp.le.s32.totalorder 1, %s9
    %p112 = scmp.lt.s32.totalorder %s9, 5
    %p113 = pnand %p111, %p112
    %p114 = pneg %p113
    // Predicated region
    $region9: #{conv_bn.3} parent=5 // pred_check
      _
    $region10: #{conv_bn.3} parent=5 // pred_check_branch
      %116 = sbr.rel (%p113) target = $region12
    $region11: #{conv_bn.3} parent=5 // pred_region
      %s117 = ssub.s32 %s9, 1
      // Predicated region
      $region13: #{conv_bn.3} parent=11 // pred_check
        %p118 = pneg %p56
      $region14: #{conv_bn.3} parent=11 // pred_check_branch
        %120 = sbr.rel (%p118) target = $region16
      $region15: #{conv_bn.3} parent=11 // pred_region
        _
      $region16: #{conv_bn.3} parent=11 // pred_fallthru
        _
      // Predicated region
      $region17: #{conv_bn.3} parent=11 // pred_check
        %p121 = pneg %p77
      $region18: #{conv_bn.3} parent=11 // pred_check_branch
        %123 = sbr.rel (%p121) target = $region20
      $region19: #{conv_bn.3} parent=11 // pred_region
        _
      $region20: #{conv_bn.3} parent=11 // pred_fallthru
        _
    $region12: #{conv_bn.3} parent=5 // pred_fallthru
      _
    %p124 = scmp.lt.s32.totalorder %s9, 4
    // Predicated region
    $region21: #{conv_bn.3} parent=5 // pred_check
      %p125 = pneg %p124
    $region22: #{conv_bn.3} parent=5 // pred_check_branch
      %127 = sbr.rel (%p125) target = $region24
    $region23: #{conv_bn.3} parent=5 // pred_region
      // Predicated region
      $region25: #{conv_bn.3} parent=23 // pred_check
        %p128 = pneg %p29
      $region26: #{conv_bn.3} parent=23 // pred_check_branch
        %130 = sbr.rel (%p128) target = $region28
      $region27: #{conv_bn.3} parent=23 // pred_region
        %s131 = smul.u32 16, %s9
        %p132 = scmp.lt.s32.totalorder %s131, 63
        %s133 = scalar_select %p132, %s131, 63
        %s134 = smul.addr %s133, 4
        %s135 = scalar_lea.vmem %s0, %s134
        %s136 = smul.u32 16, %s9
      $region28: #{conv_bn.3} parent=23 // pred_fallthru
        _
    $region24: #{conv_bn.3} parent=5 // pred_fallthru
      _
    %p137 = scmp.le.s32.totalorder 1, %s9
    %p138 = scmp.lt.s32.totalorder %s9, 5
    %p139 = pnand %p137, %p138
    %p140 = pneg %p139
    // Predicated region
    $region29: #{conv_bn.3} parent=5 // pred_check
      _
    $region30: #{conv_bn.3} parent=5 // pred_check_branch
      %142 = sbr.rel (%p139) target = $region32
    $region31: #{conv_bn.3} parent=5 // pred_region
      %s143 = ssub.s32 %s9, 1
      %s144 = smul.u32 16, %s14
      %p145 = scmp.lt.s32.totalorder %s144, 63
      %s146 = scalar_select %p145, %s144, 63
      %s147 = smul.addr %s146, 4
      %s148 = scalar_lea.vmem %s0, %s147
      %p149 = pneg %p35
      %p150 = pneg %p32
      %p151 = pneg %p56
      %p152 = pneg %p53
      %p153 = pneg %p77
      %p154 = pneg %p74
      %p155 = pneg %p103
      %p156 = pneg %p100
      %s157 = smul.u32 16, %s14
      %p158 = scmp.lt.s32.totalorder %s157, 63
      %s159 = scalar_select %p158, %s157, 63
      %s160 = smul.addr %s159, 8
      %s161 = scalar_lea.vmem %s3, %s160
      %s162 = smul.u32 16, %s14
      %p163 = scmp.lt.s32.totalorder %s162, 63
      %s164 = scalar_select %p163, %s162, 63
      %s165 = smul.addr %s164, 4
      %s166 = scalar_lea.vmem %s0, %s165
      %s167 = smul.u32 16, %s14
      %s168 = smul.u32 16, %s14
      %p169 = scmp.lt.s32.totalorder %s168, 63
      %s170 = scalar_select %p169, %s168, 63
      %s171 = smul.addr %s170, 8
      %s172 = scalar_lea.vmem %s3, %s171
      %s173 = smul.u32 16, %s14
      %v174 = vld [vmem:[%s166] sm:$0xf]
      %v175 = vld [vmem:[%s166 + $0x4] sm:$0xf]
      %v176 = vld [vmem:[%s166 + $0x8] sm:$0xf]
      %v177 = vld [vmem:[%s166 + $0xc] sm:$0xf]
      %v178 = vld [vmem:[%s166 + $0x10] sm:$0xf]
      %v179 = vld [vmem:[%s166 + $0x14] sm:$0xf]
      %v180 = vld [vmem:[%s166 + $0x18] sm:$0xf]
      %v181 = vld [vmem:[%s166 + $0x1c] sm:$0xf]
      %v182 = vld [vmem:[%s166 + $0x20] sm:$0xf]
      %v183 = vld [vmem:[%s166 + $0x24] sm:$0xf]
      %v184 = vld [vmem:[%s166 + $0x28] sm:$0xf]
      %v185 = vld [vmem:[%s166 + $0x2c] sm:$0xf]
      %v186 = vld [vmem:[%s166 + $0x30] sm:$0xf]
      %v187 = vld [vmem:[%s166 + $0x34] sm:$0xf]
      %v188 = vld [vmem:[%s166 + $0x38] sm:$0xf]
      %v189 = vld [vmem:[%s166 + $0x3c] sm:$0xf]
      %v190 = vunpack.c.l.bf16 %v174
      %v191 = vunpack.c.l.bf16 %v175
      %v192 = vunpack.c.l.bf16 %v176
      %v193 = vunpack.c.l.bf16 %v177
      %v194 = vunpack.c.l.bf16 %v178
      %v195 = vunpack.c.l.bf16 %v179
      %v196 = vunpack.c.l.bf16 %v180
      %v197 = vunpack.c.l.bf16 %v181
      %v198 = vunpack.c.l.bf16 %v182
      %v199 = vunpack.c.l.bf16 %v183
      %v200 = vunpack.c.l.bf16 %v184
      %v201 = vunpack.c.l.bf16 %v185
      %v202 = vunpack.c.l.bf16 %v186
      %v203 = vunpack.c.l.bf16 %v187
      %v204 = vunpack.c.l.bf16 %v188
      %v205 = vunpack.c.l.bf16 %v189
      %v206 = vld [vmem:[%s1] sm:$0x1]
      %v208 = vlaneseq
      %v209 = vshrl.u32 %v208, 7
      %v210 = vsub.s32 0, %v209
      %v211 = vrot.slane %v206, %v210
      %v213 = vmul.f32 %v190, %v211
      %v214 = vmul.f32 %v191, %v211
      %v215 = vmul.f32 %v192, %v211
      %v216 = vmul.f32 %v193, %v211
      %v217 = vmul.f32 %v194, %v211
      %v218 = vmul.f32 %v195, %v211
      %v219 = vmul.f32 %v196, %v211
      %v220 = vmul.f32 %v197, %v211
      %v221 = vmul.f32 %v198, %v211
      %v222 = vmul.f32 %v199, %v211
      %v223 = vmul.f32 %v200, %v211
      %v224 = vmul.f32 %v201, %v211
      %v225 = vmul.f32 %v202, %v211
      %v226 = vmul.f32 %v203, %v211
      %v227 = vmul.f32 %v204, %v211
      %v228 = vmul.f32 %v205, %v211
      %v229 = vld [vmem:[%s2] sm:$0x1]
      %v231 = vlaneseq
      %v232 = vshrl.u32 %v231, 7
      %v233 = vsub.s32 0, %v232
      %v234 = vrot.slane %v229, %v233
      %v236 = vadd.f32 %v213, %v234
      %v237 = vadd.f32 %v214, %v234
      %v238 = vadd.f32 %v215, %v234
      %v239 = vadd.f32 %v216, %v234
      %v240 = vadd.f32 %v217, %v234
      %v241 = vadd.f32 %v218, %v234
      %v242 = vadd.f32 %v219, %v234
      %v243 = vadd.f32 %v220, %v234
      %v244 = vadd.f32 %v221, %v234
      %v245 = vadd.f32 %v222, %v234
      %v246 = vadd.f32 %v223, %v234
      %v247 = vadd.f32 %v224, %v234
      %v248 = vadd.f32 %v225, %v234
      %v249 = vadd.f32 %v226, %v234
      %v250 = vadd.f32 %v227, %v234
      %v251 = vadd.f32 %v228, %v234
      %252 = vst [vmem:[%s172] sm:$0xff] %v236
      %253 = vst [vmem:[%s172 + $0x8] sm:$0xff] %v237
      %254 = vst [vmem:[%s172 + $0x10] sm:$0xff] %v238
      %255 = vst [vmem:[%s172 + $0x18] sm:$0xff] %v239
      %256 = vst [vmem:[%s172 + $0x20] sm:$0xff] %v240
      %257 = vst [vmem:[%s172 + $0x28] sm:$0xff] %v241
      %258 = vst [vmem:[%s172 + $0x30] sm:$0xff] %v242
      %259 = vst [vmem:[%s172 + $0x38] sm:$0xff] %v243
      %260 = vst [vmem:[%s172 + $0x40] sm:$0xff] %v244
      %261 = vst [vmem:[%s172 + $0x48] sm:$0xff] %v245
      %262 = vst [vmem:[%s172 + $0x50] sm:$0xff] %v246
      %263 = vst [vmem:[%s172 + $0x58] sm:$0xff] %v247
      %264 = vst [vmem:[%s172 + $0x60] sm:$0xff] %v248
      %265 = vst [vmem:[%s172 + $0x68] sm:$0xff] %v249
      %266 = vst [vmem:[%s172 + $0x70] sm:$0xff] %v250
      %267 = vst [vmem:[%s172 + $0x78] sm:$0xff] %v251
      %s268 = smul.u32 16, %s14
      %p269 = scmp.lt.s32.totalorder %s268, 63
      %s270 = scalar_select %p269, %s268, 63
      %s271 = smul.addr %s270, 8
      %s272 = scalar_lea.vmem %s3, %s271
      // Predicated region
      $region33: #{conv_bn.3} parent=31 // pred_check
        %p273 = pneg %p100
      $region34: #{conv_bn.3} parent=31 // pred_check_branch
        %275 = sbr.rel (%p273) target = $region36
      $region35: #{conv_bn.3} parent=31 // pred_region
        %s276 = smul.u32 16, %s14
      $region36: #{conv_bn.3} parent=31 // pred_fallthru
        _
    $region32: #{conv_bn.3} parent=5 // pred_fallthru
      _
    %p277 = scmp.le.s32.totalorder 2, %s9
    // Predicated region
    $region37: #{conv_bn.3} parent=5 // pred_check
      %p278 = pneg %p277
    $region38: #{conv_bn.3} parent=5 // pred_check_branch
      %280 = sbr.rel (%p278) target = $region40
    $region39: #{conv_bn.3} parent=5 // pred_region
      %s281 = ssub.s32 %s9, 2
      // Predicated region
      $region41: #{conv_bn.3} parent=39 // pred_check
        %p282 = pneg %p106
      $region42: #{conv_bn.3} parent=39 // pred_check_branch
        %284 = sbr.rel (%p282) target = $region44
      $region43: #{conv_bn.3} parent=39 // pred_region
        %s285 = smul.u32 16, %s15
        %p286 = scmp.lt.s32.totalorder %s285, 63
        %s287 = scalar_select %p286, %s285, 63
        %s288 = smul.addr %s287, 8
        %s289 = scalar_lea.vmem %s3, %s288
      $region44: #{conv_bn.3} parent=39 // pred_fallthru
        _
    $region40: #{conv_bn.3} parent=5 // pred_fallthru
      _
  $region6: #{conv_bn.3} parent=0 // loop_footer
    %s13 = sadd.s32 1, %s9
  $region7: #{conv_bn.3} parent=0 // loop_footer_branch
    %8 = sbr.rel target = $region3
  $region8: #{conv_bn.3} parent=0 // loop_exit
    _

// kernel: conv_bn.2
$region0: #{conv_bn.2}
  #allocation0 [shape = 'u32[]', space=smem, size = 0x4, offset = 0x4, fixed_abs, tag = 'smem constant byte address 0x4 - core index']
  #allocation1 [shape = 'u32[144,128]{1,0:T(1,128)}', space=vmem, size = 0x12000, scoped, tag = 'internal scratch']
  %s0 = inlined_call_operand.vmem [shape: bf16[512,128], index: 0, kind: input, shape index: {}]
  %s1 = inlined_call_operand.vmem [shape: bf16[128,128], index: 1, kind: input, shape index: {}]
  %s2 = inlined_call_operand.vmem [shape: bf16[512,128], index: 2, kind: output, shape index: {0}]
  %s3 = inlined_call_operand.vmem [shape: f32[32,128], index: 3, kind: output, shape index: {1}]
  %4 = xla_tuple %s2, %s3
  %s5 = sld [smem:[#allocation0]]
  $region49: #{conv_bn.2} parent=0
    _
  %s7 = ssub.s32 1, %s5
  %s8 = scalar_select 0, %s7, %s5
  loop: start=0, step=1, limit=6
  $region2: #{conv_bn.2} parent=0 // loop_pre_header
    _
  $region3: #{conv_bn.2} parent=0 // loop_header
    %s10 = sphi 0, %s14
    %p11 = scmp.ge.s32.totalorder %s10, 6
    %s17 = sphi 0, %s29
    %s18 = sphi 0, %s25
    %s19 = sphi 0, %s17
    %s20 = sphi 0, %s18
    %s21 = sphi 0, %s19
    %s22 = sphi 0, %s20
    %s32 = sphi 0, %s34
    %s35 = sphi 0, %s32
    %s36 = sphi 0, %s35
    %s52 = sphi 0, %s36
    %s58 = sphi 0, %s60
    %s61 = sphi 0, %s58
    %s62 = sphi 0, %s61
    %s78 = sphi 0, %s62
    %s86 = sphi 0, %s88
    %s89 = sphi 0, %s86
    %s90 = sphi 0, %s89
    %s106 = sphi 0, %s90
    %s114 = sphi 0, %s116
    %s117 = sphi 0, %s114
    %s118 = sphi 0, %s117
    %s134 = sphi 0, %s118
  $region4: #{conv_bn.2} parent=0 // loop_header_branch
    %13 = sbr.rel (%p11) target = $region8
  $region5: #{conv_bn.2} parent=0 // loop_body
    %s15 = ssub.s32 %s10, 1
    %s16 = ssub.s32 %s10, 2
    %s23 = sadd.s32 1, %s18
    %p24 = scmp.ge.s32.totalorder %s23, 1
    %s25 = scalar_select %p24, 0, %s23
    %s26 = sadd.s32 1, %s17
    %s27 = scalar_select %p24, %s26, %s17
    %p28 = scmp.ge.s32.totalorder %s27, 4
    %s29 = scalar_select %p28, 0, %s27
    %s30 = ssub.s32 %s17, %s29
    %p31 = scmp.eq.s32.totalorder %s30, 0
    %s33 = sadd.s32 %s32, 1
    %s34 = scalar_select %p31, %s32, %s33
    %p37 = pneg %p31
    %p38 = scmp.eq.s32.totalorder %s10, 3
    %p39 = por %p37, %p38
    %p40 = scmp.ne.s32.totalorder %s32, %s35
    %p41 = scmp.eq.s32.totalorder %s10, 0
    %p42 = por %p40, %p41
    %p43 = scmp.ne.s32.totalorder %s32, %s35
    %p44 = scmp.eq.s32.totalorder %s15, 3
    %p45 = por %p43, %p44
    %p46 = scmp.ne.s32.totalorder %s35, %s36
    %p47 = scmp.eq.s32.totalorder %s15, 0
    %p48 = por %p46, %p47
    %p49 = scmp.ne.s32.totalorder %s35, %s36
    %p50 = scmp.eq.s32.totalorder %s16, 3
    %p51 = por %p49, %p50
    %p53 = scmp.ne.s32.totalorder %s36, %s52
    %p54 = scmp.eq.s32.totalorder %s16, 0
    %p55 = por %p53, %p54
    %s56 = ssub.s32 %s18, %s25
    %p57 = scmp.eq.s32.totalorder %s56, 0
    %s59 = sadd.s32 %s58, 1
    %s60 = scalar_select %p57, %s58, %s59
    %p63 = pneg %p57
    %p64 = scmp.eq.s32.totalorder %s10, 3
    %p65 = por %p63, %p64
    %p66 = scmp.ne.s32.totalorder %s58, %s61
    %p67 = scmp.eq.s32.totalorder %s10, 0
    %p68 = por %p66, %p67
    %p69 = scmp.ne.s32.totalorder %s58, %s61
    %p70 = scmp.eq.s32.totalorder %s15, 3
    %p71 = por %p69, %p70
    %p72 = scmp.ne.s32.totalorder %s61, %s62
    %p73 = scmp.eq.s32.totalorder %s15, 0
    %p74 = por %p72, %p73
    %p75 = scmp.ne.s32.totalorder %s61, %s62
    %p76 = scmp.eq.s32.totalorder %s16, 3
    %p77 = por %p75, %p76
    %p79 = scmp.ne.s32.totalorder %s62, %s78
    %p80 = scmp.eq.s32.totalorder %s16, 0
    %p81 = por %p79, %p80
    %s82 = ssub.s32 %s17, %s29
    %s83 = ssub.s32 %s18, %s25
    %s84 = sor.u32 %s82, %s83
    %p85 = scmp.eq.s32.totalorder %s84, 0
    %s87 = sadd.s32 %s86, 1
    %s88 = scalar_select %p85, %s86, %s87
    %p91 = pneg %p85
    %p92 = scmp.eq.s32.totalorder %s10, 3
    %p93 = por %p91, %p92
    %p94 = scmp.ne.s32.totalorder %s86, %s89
    %p95 = scmp.eq.s32.totalorder %s10, 0
    %p96 = por %p94, %p95
    %p97 = scmp.ne.s32.totalorder %s86, %s89
    %p98 = scmp.eq.s32.totalorder %s15, 3
    %p99 = por %p97, %p98
    %p100 = scmp.ne.s32.totalorder %s89, %s90
    %p101 = scmp.eq.s32.totalorder %s15, 0
    %p102 = por %p100, %p101
    %p103 = scmp.ne.s32.totalorder %s89, %s90
    %p104 = scmp.eq.s32.totalorder %s16, 3
    %p105 = por %p103, %p104
    %p107 = scmp.ne.s32.totalorder %s90, %s106
    %p108 = scmp.eq.s32.totalorder %s16, 0
    %p109 = por %p107, %p108
    %s110 = ssub.s32 %s17, %s29
    %s111 = ssub.s32 %s18, %s25
    %s112 = sor.u32 %s110, %s111
    %p113 = scmp.eq.s32.totalorder %s112, 0
    %s115 = sadd.s32 %s114, 1
    %s116 = scalar_select %p113, %s114, %s115
    %p119 = pneg %p113
    %p120 = scmp.eq.s32.totalorder %s10, 3
    %p121 = por %p119, %p120
    %p122 = scmp.ne.s32.totalorder %s114, %s117
    %p123 = scmp.eq.s32.totalorder %s10, 0
    %p124 = por %p122, %p123
    %p125 = scmp.ne.s32.totalorder %s114, %s117
    %p126 = scmp.eq.s32.totalorder %s15, 3
    %p127 = por %p125, %p126
    %p128 = scmp.ne.s32.totalorder %s117, %s118
    %p129 = scmp.eq.s32.totalorder %s15, 0
    %p130 = por %p128, %p129
    %p131 = scmp.ne.s32.totalorder %s117, %s118
    %p132 = scmp.eq.s32.totalorder %s16, 3
    %p133 = por %p131, %p132
    %p135 = scmp.ne.s32.totalorder %s118, %s134
    %p136 = scmp.eq.s32.totalorder %s16, 0
    %p137 = por %p135, %p136
    %p138 = scmp.le.s32.totalorder 1, %s10
    %p139 = scmp.lt.s32.totalorder %s10, 5
    %p140 = pnand %p138, %p139
    %p141 = pneg %p140
    // Predicated region
    $region9: #{conv_bn.2} parent=5 // pred_check
      _
    $region10: #{conv_bn.2} parent=5 // pred_check_branch
      %143 = sbr.rel (%p140) target = $region12
    $region11: #{conv_bn.2} parent=5 // pred_region
      %s144 = ssub.s32 %s10, 1
      // Predicated region
      $region13: #{conv_bn.2} parent=11 // pred_check
        %p145 = pneg %p74
      $region14: #{conv_bn.2} parent=11 // pred_check_branch
        %147 = sbr.rel (%p145) target = $region16
      $region15: #{conv_bn.2} parent=11 // pred_region
        %p148 = scmp.lt.s32.totalorder %s20, 0
        %s149 = scalar_select %p148, %s20, 0
        %s150 = smul.addr %s149, 4
        %s151 = scalar_lea.vmem %s1, %s150
      $region16: #{conv_bn.2} parent=11 // pred_fallthru
        _
    $region12: #{conv_bn.2} parent=5 // pred_fallthru
      _
    %p152 = scmp.lt.s32.totalorder %s10, 4
    // Predicated region
    $region17: #{conv_bn.2} parent=5 // pred_check
      %p153 = pneg %p152
    $region18: #{conv_bn.2} parent=5 // pred_check_branch
      %155 = sbr.rel (%p153) target = $region20
    $region19: #{conv_bn.2} parent=5 // pred_region
      // Predicated region
      $region21: #{conv_bn.2} parent=19 // pred_check
        %p156 = pneg %p42
      $region22: #{conv_bn.2} parent=19 // pred_check_branch
        %158 = sbr.rel (%p156) target = $region24
      $region23: #{conv_bn.2} parent=19 // pred_region
        %s159 = smul.u32 16, %s17
        %p160 = scmp.lt.s32.totalorder %s159, 63
        %s161 = scalar_select %p160, %s159, 63
        %s162 = smul.addr %s161, 4
        %s163 = scalar_lea.vmem %s0, %s162
        %s164 = smul.u32 16, %s17
      $region24: #{conv_bn.2} parent=19 // pred_fallthru
        _
    $region20: #{conv_bn.2} parent=5 // pred_fallthru
      _
    %p165 = scmp.le.s32.totalorder 1, %s10
    %p166 = scmp.lt.s32.totalorder %s10, 5
    %p167 = pnand %p165, %p166
    %p168 = pneg %p167
    // Predicated region
    $region25: #{conv_bn.2} parent=5 // pred_check
      _
    $region26: #{conv_bn.2} parent=5 // pred_check_branch
      %170 = sbr.rel (%p167) target = $region28
    $region27: #{conv_bn.2} parent=5 // pred_region
      %s171 = ssub.s32 %s10, 1
      %s172 = smul.u32 16, %s19
      %p173 = scmp.lt.s32.totalorder %s172, 63
      %s174 = scalar_select %p173, %s172, 63
      %s175 = smul.addr %s174, 4
      %s176 = scalar_lea.vmem %s0, %s175
      %p177 = pneg %p48
      %p178 = pneg %p45
      %p179 = scmp.lt.s32.totalorder %s20, 0
      %s180 = scalar_select %p179, %s20, 0
      %s181 = smul.addr %s180, 4
      %s182 = scalar_lea.vmem %s1, %s181
      %p183 = pneg %p74
      %p184 = pneg %p71
      %p185 = pneg %p102
      %p186 = pneg %p99
      %s187 = smul.u32 16, %s19
      %p188 = scmp.lt.s32.totalorder %s187, 63
      %s189 = scalar_select %p188, %s187, 63
      %p190 = scmp.lt.s32.totalorder %s20, 0
      %s191 = scalar_select %p190, %s20, 0
      %s192 = sadd.s32 %s191, %s189
      %s193 = smul.addr %s192, 4
      %s194 = scalar_lea.vmem %s2, %s193
      %p195 = pneg %p130
      %p196 = pneg %p127
      %p197 = scmp.lt.s32.totalorder %s19, 3
      %s198 = scalar_select %p197, %s19, 3
      %p199 = scmp.lt.s32.totalorder %s20, 0
      %s200 = scalar_select %p199, %s20, 0
      %s201 = sadd.s32 %s200, %s198
      %s202 = smul.addr %s201, 8
      %s203 = scalar_lea.vmem %s3, %s202
      %s204 = smul.u32 16, %s19
      %p205 = scmp.lt.s32.totalorder %s204, 63
      %s206 = scalar_select %p205, %s204, 63
      %s207 = smul.addr %s206, 4
      %s208 = scalar_lea.vmem %s0, %s207
      %s209 = smul.u32 16, %s19
      %p210 = scmp.lt.s32.totalorder %s20, 0
      %s211 = scalar_select %p210, %s20, 0
      %s212 = smul.addr %s211, 4
      %s213 = scalar_lea.vmem %s1, %s212
      %s214 = smul.u32 16, %s19
      %p215 = scmp.lt.s32.totalorder %s214, 63
      %s216 = scalar_select %p215, %s214, 63
      %p217 = scmp.lt.s32.totalorder %s20, 0
      %s218 = scalar_select %p217, %s20, 0
      %s219 = sadd.s32 %s218, %s216
      %s220 = smul.addr %s219, 4
      %s221 = scalar_lea.vmem %s2, %s220
      %s222 = smul.u32 16, %s19
      %p223 = scmp.lt.s32.totalorder %s19, 3
      %s224 = scalar_select %p223, %s19, 3
      %p225 = scmp.lt.s32.totalorder %s20, 0
      %s226 = scalar_select %p225, %s20, 0
      %s227 = sadd.s32 %s226, %s224
      %s228 = smul.addr %s227, 8
      %s229 = scalar_lea.vmem %s3, %s228
      %v231 = vld [vmem:[%s208] sm:$0xf]
      %v232 = vld [vmem:[%s208 + $0x4] sm:$0xf]
      %v233 = vld [vmem:[%s208 + $0x8] sm:$0xf]
      %v234 = vld [vmem:[%s208 + $0xc] sm:$0xf]
      %v235 = vld [vmem:[%s208 + $0x10] sm:$0xf]
      %v236 = vld [vmem:[%s208 + $0x14] sm:$0xf]
      %v237 = vld [vmem:[%s208 + $0x18] sm:$0xf]
      %v238 = vld [vmem:[%s208 + $0x1c] sm:$0xf]
      %v239 = vld [vmem:[%s208 + $0x20] sm:$0xf]
      %v240 = vld [vmem:[%s208 + $0x24] sm:$0xf]
      %v241 = vld [vmem:[%s208 + $0x28] sm:$0xf]
      %v242 = vld [vmem:[%s208 + $0x2c] sm:$0xf]
      %v243 = vld [vmem:[%s208 + $0x30] sm:$0xf]
      %v244 = vld [vmem:[%s208 + $0x34] sm:$0xf]
      %v245 = vld [vmem:[%s208 + $0x38] sm:$0xf]
      %v246 = vld [vmem:[%s208 + $0x3c] sm:$0xf]
      %v247 = vld [vmem:[%s213] sm:$0xf]
      %v248 = vld [vmem:[%s213 + $0x4] sm:$0xf]
      %v249 = vld [vmem:[%s213 + $0x8] sm:$0xf]
      %v250 = vld [vmem:[%s213 + $0xc] sm:$0xf]
      %v251 = vld [vmem:[%s213 + $0x10] sm:$0xf]
      %v252 = vld [vmem:[%s213 + $0x14] sm:$0xf]
      %v253 = vld [vmem:[%s213 + $0x18] sm:$0xf]
      %v254 = vld [vmem:[%s213 + $0x1c] sm:$0xf]
      %v255 = vld [vmem:[%s213 + $0x20] sm:$0xf]
      %v256 = vld [vmem:[%s213 + $0x24] sm:$0xf]
      %v257 = vld [vmem:[%s213 + $0x28] sm:$0xf]
      %v258 = vld [vmem:[%s213 + $0x2c] sm:$0xf]
      %v259 = vld [vmem:[%s213 + $0x30] sm:$0xf]
      %v260 = vld [vmem:[%s213 + $0x34] sm:$0xf]
      %v261 = vld [vmem:[%s213 + $0x38] sm:$0xf]
      %v262 = vld [vmem:[%s213 + $0x3c] sm:$0xf]
      %v279 = vunpack.c.l.b16 %v231
      %v280 = vunpack.c.l.b16 %v232
      %v281 = vunpack.c.l.b16 %v233
      %v282 = vunpack.c.l.b16 %v234
      %v283 = vunpack.c.l.b16 %v235
      %v284 = vunpack.c.l.b16 %v236
      %v285 = vunpack.c.l.b16 %v237
      %v286 = vunpack.c.l.b16 %v238
      %v287 = vunpack.c.l.b16 %v239
      %v288 = vunpack.c.l.b16 %v240
      %v289 = vunpack.c.l.b16 %v241
      %v290 = vunpack.c.l.b16 %v242
      %v291 = vunpack.c.l.b16 %v243
      %v292 = vunpack.c.l.b16 %v244
      %v293 = vunpack.c.l.b16 %v245
      %v294 = vunpack.c.l.b16 %v246
      %v295 = vpack.c.b16 %v280, %v279
      %v296 = vpack.c.b16 %v282, %v281
      %v297 = vpack.c.b16 %v284, %v283
      %v298 = vpack.c.b16 %v286, %v285
      %v299 = vpack.c.b16 %v288, %v287
      %v300 = vpack.c.b16 %v290, %v289
      %v301 = vpack.c.b16 %v292, %v291
      %v302 = vpack.c.b16 %v294, %v293
      %v327 = vunpack.c.l.b16 %v247
      %v328 = vunpack.c.l.b16 %v248
      %v329 = vunpack.c.l.b16 %v249
      %v330 = vunpack.c.l.b16 %v250
      %v331 = vunpack.c.l.b16 %v251
      %v332 = vunpack.c.l.b16 %v252
      %v333 = vunpack.c.l.b16 %v253
      %v334 = vunpack.c.l.b16 %v254
      %v335 = vunpack.c.l.b16 %v255
      %v336 = vunpack.c.l.b16 %v256
      %v337 = vunpack.c.l.b16 %v257
      %v338 = vunpack.c.l.b16 %v258
      %v339 = vunpack.c.l.b16 %v259
      %v340 = vunpack.c.l.b16 %v260
      %v341 = vunpack.c.l.b16 %v261
      %v342 = vunpack.c.l.b16 %v262
      %v343 = vpack.c.b16 %v328, %v327
      %v344 = vpack.c.b16 %v330, %v329
      %v345 = vpack.c.b16 %v332, %v331
      %v346 = vpack.c.b16 %v334, %v333
      %v347 = vpack.c.b16 %v336, %v335
      %v348 = vpack.c.b16 %v338, %v337
      %v349 = vpack.c.b16 %v340, %v339
      %v350 = vpack.c.b16 %v342, %v341
      %359 = vmatprep.subr.bf16.mxu0 0
      %360 = vmatpush1.bf16.msra.mxu0 %v343
      %361 = vmatprep.subr.bf16.mxu0 0
      %362 = vmatpush1.bf16.msra.mxu0 %v344
      %363 = vmatprep.subr.bf16.mxu0 0
      %364 = vmatpush1.bf16.msra.mxu0 %v345
      %365 = vmatprep.subr.bf16.mxu0 0
      %366 = vmatpush1.bf16.msra.mxu0 %v346
      %367 = vmatprep.subr.bf16.mxu0 0
      %368 = vmatpush1.bf16.msra.mxu0 %v347
      %369 = vmatprep.subr.bf16.mxu0 0
      %370 = vmatpush1.bf16.msra.mxu0 %v348
      %371 = vmatprep.subr.bf16.mxu0 0
      %372 = vmatpush1.bf16.msra.mxu0 %v349
      %373 = vmatprep.subr.bf16.mxu0 0
      %374 = vmatpush1.bf16.msra.mxu0 %v350
      %375 = vmatprep.subr.bf16.mxu0 0
      %376 = vmatpush1.bf16.msra.mxu0 0
      %377 = vmatprep.subr.bf16.mxu0 0
      %378 = vmatpush1.bf16.msra.mxu0 0
      %379 = vmatprep.subr.bf16.mxu0 0
      %380 = vmatpush1.bf16.msra.mxu0 0
      %381 = vmatprep.subr.bf16.mxu0 0
      %382 = vmatpush1.bf16.msra.mxu0 0
      %383 = vmatprep.subr.bf16.mxu0 0
      %384 = vmatpush1.bf16.msra.mxu0 0
      %385 = vmatprep.subr.bf16.mxu0 0
      %386 = vmatpush1.bf16.msra.mxu0 0
      %387 = vmatprep.subr.bf16.mxu0 0
      %388 = vmatpush1.bf16.msra.mxu0 0
      %389 = vmatprep.subr.bf16.mxu0 0
      %390 = vmatpush1.bf16.msra.mxu0 0
      %391 = vmatprep.mubr.bf16.mxu0 0
      %392 = vmatmul.mubr.bf16.gmra.mrb[0].mxu0 %v295
      %v393 = vpop.f32.mrb[0].mxu0
      %v394 = vadd.f32 0.0, %v393
      %v395 = vpop.f32.mrb[0].mxu0
      %v396 = vpop.f32.mrb[0].mxu0
      %v397 = vadd.f32 0.0, %v396
      %v398 = vpop.f32.mrb[0].mxu0
      %399 = vmatprep.mubr.bf16.mxu0 0
      %400 = vmatmul.mubr.bf16.gmra.mrb[0].mxu0 %v296
      %v401 = vpop.f32.mrb[0].mxu0
      %v402 = vadd.f32 0.0, %v401
      %v403 = vpop.f32.mrb[0].mxu0
      %v404 = vpop.f32.mrb[0].mxu0
      %v405 = vadd.f32 0.0, %v404
      %v406 = vpop.f32.mrb[0].mxu0
      %407 = vmatprep.mubr.bf16.mxu0 0
      %408 = vmatmul.mubr.bf16.gmra.mrb[0].mxu0 %v297
      %v409 = vpop.f32.mrb[0].mxu0
      %v410 = vadd.f32 0.0, %v409
      %v411 = vpop.f32.mrb[0].mxu0
      %v412 = vpop.f32.mrb[0].mxu0
      %v413 = vadd.f32 0.0, %v412
      %v414 = vpop.f32.mrb[0].mxu0
      %415 = vmatprep.mubr.bf16.mxu0 0
      %416 = vmatmul.mubr.bf16.gmra.mrb[0].mxu0 %v298
      %v417 = vpop.f32.mrb[0].mxu0
      %v418 = vadd.f32 0.0, %v417
      %v419 = vpop.f32.mrb[0].mxu0
      %v420 = vpop.f32.mrb[0].mxu0
      %v421 = vadd.f32 0.0, %v420
      %v422 = vpop.f32.mrb[0].mxu0
      %423 = vmatprep.mubr.bf16.mxu0 0
      %424 = vmatmul.mubr.bf16.gmra.mrb[0].mxu0 %v299
      %v425 = vpop.f32.mrb[0].mxu0
      %v426 = vadd.f32 0.0, %v425
      %v427 = vpop.f32.mrb[0].mxu0
      %v428 = vpop.f32.mrb[0].mxu0
      %v429 = vadd.f32 0.0, %v428
      %v430 = vpop.f32.mrb[0].mxu0
      %431 = vmatprep.mubr.bf16.mxu0 0
      %432 = vmatmul.mubr.bf16.gmra.mrb[0].mxu0 %v300
      %v433 = vpop.f32.mrb[0].mxu0
      %v434 = vadd.f32 0.0, %v433
      %v435 = vpop.f32.mrb[0].mxu0
      %v436 = vpop.f32.mrb[0].mxu0
      %v437 = vadd.f32 0.0, %v436
      %v438 = vpop.f32.mrb[0].mxu0
      %439 = vmatprep.mubr.bf16.mxu0 0
      %440 = vmatmul.mubr.bf16.gmra.mrb[0].mxu0 %v301
      %v441 = vpop.f32.mrb[0].mxu0
      %v442 = vadd.f32 0.0, %v441
      %v443 = vpop.f32.mrb[0].mxu0
      %v444 = vpop.f32.mrb[0].mxu0
      %v445 = vadd.f32 0.0, %v444
      %v446 = vpop.f32.mrb[0].mxu0
      %447 = vmatprep.mubr.bf16.mxu0 0
      %448 = vmatmul.mubr.bf16.gmra.mrb[0].mxu0 %v302
      %v449 = vpop.f32.mrb[0].mxu0
      %v450 = vadd.f32 0.0, %v449
      %v451 = vpop.f32.mrb[0].mxu0
      %v452 = vpop.f32.mrb[0].mxu0
      %v453 = vadd.f32 0.0, %v452
      %v454 = vpop.f32.mrb[0].mxu0
      %455 = vdwg.mxu0
      %v456 = vpack.c.bf16 %v397, %v394
      %v457 = vpack.c.bf16 %v405, %v402
      %v458 = vpack.c.bf16 %v413, %v410
      %v459 = vpack.c.bf16 %v421, %v418
      %v460 = vpack.c.bf16 %v429, %v426
      %v461 = vpack.c.bf16 %v437, %v434
      %v462 = vpack.c.bf16 %v445, %v442
      %v463 = vpack.c.bf16 %v453, %v450
      %v472 = vunpack.c.l.b16 %v456
      %v473 = vunpack.c.h.b16 %v456
      %v474 = vunpack.c.l.b16 %v457
      %v475 = vunpack.c.h.b16 %v457
      %v476 = vunpack.c.l.b16 %v458
      %v477 = vunpack.c.h.b16 %v458
      %v478 = vunpack.c.l.b16 %v459
      %v479 = vunpack.c.h.b16 %v459
      %v480 = vunpack.c.l.b16 %v460
      %v481 = vunpack.c.h.b16 %v460
      %v482 = vunpack.c.l.b16 %v461
      %v483 = vunpack.c.h.b16 %v461
      %v484 = vunpack.c.l.b16 %v462
      %v485 = vunpack.c.h.b16 %v462
      %v486 = vunpack.c.l.b16 %v463
      %v487 = vunpack.c.h.b16 %v463
      %v488 = vpack.c.b16 %v472, %v472
      %v489 = vpack.c.b16 %v473, %v473
      %v490 = vpack.c.b16 %v474, %v474
      %v491 = vpack.c.b16 %v475, %v475
      %v492 = vpack.c.b16 %v476, %v476
      %v493 = vpack.c.b16 %v477, %v477
      %v494 = vpack.c.b16 %v478, %v478
      %v495 = vpack.c.b16 %v479, %v479
      %v496 = vpack.c.b16 %v480, %v480
      %v497 = vpack.c.b16 %v481, %v481
      %v498 = vpack.c.b16 %v482, %v482
      %v499 = vpack.c.b16 %v483, %v483
      %v500 = vpack.c.b16 %v484, %v484
      %v501 = vpack.c.b16 %v485, %v485
      %v502 = vpack.c.b16 %v486, %v486
      %v503 = vpack.c.b16 %v487, %v487
      %520 = vst [vmem:[%s221] sm:$0xf] %v488
      %521 = vst [vmem:[%s221 + $0x4] sm:$0xf] %v489
      %522 = vst [vmem:[%s221 + $0x8] sm:$0xf] %v490
      %523 = vst [vmem:[%s221 + $0xc] sm:$0xf] %v491
      %524 = vst [vmem:[%s221 + $0x10] sm:$0xf] %v492
      %525 = vst [vmem:[%s221 + $0x14] sm:$0xf] %v493
      %526 = vst [vmem:[%s221 + $0x18] sm:$0xf] %v494
      %527 = vst [vmem:[%s221 + $0x1c] sm:$0xf] %v495
      %528 = vst [vmem:[%s221 + $0x20] sm:$0xf] %v496
      %529 = vst [vmem:[%s221 + $0x24] sm:$0xf] %v497
      %530 = vst [vmem:[%s221 + $0x28] sm:$0xf] %v498
      %531 = vst [vmem:[%s221 + $0x2c] sm:$0xf] %v499
      %532 = vst [vmem:[%s221 + $0x30] sm:$0xf] %v500
      %533 = vst [vmem:[%s221 + $0x34] sm:$0xf] %v501
      %534 = vst [vmem:[%s221 + $0x38] sm:$0xf] %v502
      %535 = vst [vmem:[%s221 + $0x3c] sm:$0xf] %v503
      %v536 = vadd.f32 %v394, %v397
      %v537 = vadd.f32 %v536, %v402
      %v538 = vadd.f32 %v537, %v405
      %v539 = vadd.f32 %v538, %v410
      %v540 = vadd.f32 %v539, %v413
      %v541 = vadd.f32 %v540, %v418
      %v542 = vadd.f32 %v541, %v421
      %v543 = vadd.f32 %v542, %v426
      %v544 = vadd.f32 %v543, %v429
      %v545 = vadd.f32 %v544, %v434
      %v546 = vadd.f32 %v545, %v437
      %v547 = vadd.f32 %v546, %v442
      %v548 = vadd.f32 %v547, %v445
      %v549 = vadd.f32 %v548, %v450
      %v550 = vadd.f32 %v549, %v453
      %v551 = vrot.slane %v550, 4
      %v552 = vadd.f32 %v550, %v551
      %v553 = vrot.slane %v552, 2
      %v554 = vadd.f32 %v552, %v553
      %v555 = vrot.slane %v554, 1
      %v556 = vadd.f32 %v554, %v555
      %v557 = vmul.f32 %v394, %v394
      %v558 = vmul.f32 %v397, %v397
      %v559 = vmul.f32 %v402, %v402
      %v560 = vmul.f32 %v405, %v405
      %v561 = vmul.f32 %v410, %v410
      %v562 = vmul.f32 %v413, %v413
      %v563 = vmul.f32 %v418, %v418
      %v564 = vmul.f32 %v421, %v421
      %v565 = vmul.f32 %v426, %v426
      %v566 = vmul.f32 %v429, %v429
      %v567 = vmul.f32 %v434, %v434
      %v568 = vmul.f32 %v437, %v437
      %v569 = vmul.f32 %v442, %v442
      %v570 = vmul.f32 %v445, %v445
      %v571 = vmul.f32 %v450, %v450
      %v572 = vmul.f32 %v453, %v453
      %v573 = vadd.f32 %v557, %v558
      %v574 = vadd.f32 %v573, %v559
      %v575 = vadd.f32 %v574, %v560
      %v576 = vadd.f32 %v575, %v561
      %v577 = vadd.f32 %v576, %v562
      %v578 = vadd.f32 %v577, %v563
      %v579 = vadd.f32 %v578, %v564
      %v580 = vadd.f32 %v579, %v565
      %v581 = vadd.f32 %v580, %v566
      %v582 = vadd.f32 %v581, %v567
      %v583 = vadd.f32 %v582, %v568
      %v584 = vadd.f32 %v583, %v569
      %v585 = vadd.f32 %v584, %v570
      %v586 = vadd.f32 %v585, %v571
      %v587 = vadd.f32 %v586, %v572
      %v588 = vrot.slane %v587, 4
      %v589 = vadd.f32 %v587, %v588
      %v590 = vrot.slane %v589, 2
      %v591 = vadd.f32 %v589, %v590
      %v592 = vrot.slane %v591, 1
      %v593 = vadd.f32 %v591, %v592
      %v594 = vlaneseq
      %v595 = vshrl.u32 %v594, 7
      %vm596 = vcmp.eq.s32.totalorder %v595, 0
      %vm597 = vcmp.eq.s32.totalorder %v595, 1
      %v598 = vsel %vm597, %v593, 0.0
      %v599 = vsel %vm596, %v556, %v598
      %600 = vst [vmem:[%s229] sm:$0xff] %v599
      %s601 = smul.u32 16, %s19
      %p602 = scmp.lt.s32.totalorder %s601, 63
      %s603 = scalar_select %p602, %s601, 63
      %p604 = scmp.lt.s32.totalorder %s20, 0
      %s605 = scalar_select %p604, %s20, 0
      %s606 = sadd.s32 %s605, %s603
      %s607 = smul.addr %s606, 4
      %s608 = scalar_lea.vmem %s2, %s607
      %p609 = scmp.lt.s32.totalorder %s19, 3
      %s610 = scalar_select %p609, %s19, 3
      %p611 = scmp.lt.s32.totalorder %s20, 0
      %s612 = scalar_select %p611, %s20, 0
      %s613 = sadd.s32 %s612, %s610
      %s614 = smul.addr %s613, 8
      %s615 = scalar_lea.vmem %s3, %s614
      // Predicated region
      $region29: #{conv_bn.2} parent=27 // pred_check
        %p616 = pneg %p99
      $region30: #{conv_bn.2} parent=27 // pred_check_branch
        %618 = sbr.rel (%p616) target = $region32
      $region31: #{conv_bn.2} parent=27 // pred_region
        %s619 = smul.u32 16, %s19
      $region32: #{conv_bn.2} parent=27 // pred_fallthru
        _
      // Predicated region
      $region33: #{conv_bn.2} parent=27 // pred_check
        %p620 = pneg %p127
      $region34: #{conv_bn.2} parent=27 // pred_check_branch
        %622 = sbr.rel (%p620) target = $region36
      $region35: #{conv_bn.2} parent=27 // pred_region
        _
      $region36: #{conv_bn.2} parent=27 // pred_fallthru
        _
    $region28: #{conv_bn.2} parent=5 // pred_fallthru
      _
    %p623 = scmp.le.s32.totalorder 2, %s10
    // Predicated region
    $region37: #{conv_bn.2} parent=5 // pred_check
      %p624 = pneg %p623
    $region38: #{conv_bn.2} parent=5 // pred_check_branch
      %626 = sbr.rel (%p624) target = $region40
    $region39: #{conv_bn.2} parent=5 // pred_region
      %s627 = ssub.s32 %s10, 2
      // Predicated region
      $region41: #{conv_bn.2} parent=39 // pred_check
        %p628 = pneg %p105
      $region42: #{conv_bn.2} parent=39 // pred_check_branch
        %630 = sbr.rel (%p628) target = $region44
      $region43: #{conv_bn.2} parent=39 // pred_region
        %s631 = smul.u32 16, %s21
        %p632 = scmp.lt.s32.totalorder %s631, 63
        %s633 = scalar_select %p632, %s631, 63
        %p634 = scmp.lt.s32.totalorder %s22, 0
        %s635 = scalar_select %p634, %s22, 0
        %s636 = sadd.s32 %s635, %s633
        %s637 = smul.addr %s636, 4
        %s638 = scalar_lea.vmem %s2, %s637
      $region44: #{conv_bn.2} parent=39 // pred_fallthru
        _
      // Predicated region
      $region45: #{conv_bn.2} parent=39 // pred_check
        %p639 = pneg %p133
      $region46: #{conv_bn.2} parent=39 // pred_check_branch
        %641 = sbr.rel (%p639) target = $region48
      $region47: #{conv_bn.2} parent=39 // pred_region
        %p642 = scmp.lt.s32.totalorder %s21, 3
        %s643 = scalar_select %p642, %s21, 3
        %p644 = scmp.lt.s32.totalorder %s22, 0
        %s645 = scalar_select %p644, %s22, 0
        %s646 = sadd.s32 %s645, %s643
        %s647 = smul.addr %s646, 8
        %s648 = scalar_lea.vmem %s3, %s647
      $region48: #{conv_bn.2} parent=39 // pred_fallthru
        _
    $region40: #{conv_bn.2} parent=5 // pred_fallthru
      _
  $region6: #{conv_bn.2} parent=0 // loop_footer
    %s14 = sadd.s32 1, %s10
  $region7: #{conv_bn.2} parent=0 // loop_footer_branch
    %9 = sbr.rel target = $region3
  $region8: #{conv_bn.2} parent=0 // loop_exit
    _

</llo_original>
